<compile_context>
chip_gen: v6e
topology: v6e:2x2x1
jax: 0.10.0
libtpu: 0.0.40
codegen_flags: <defaults>
</compile_context>

<pallas_src>
import jax
import jax.numpy as jnp
from jax.experimental import pallas as pl
from jax.experimental.pallas import tpu as pltpu

IN1, HID, OUT = 5, 8, 5  # fc1: 5->8, fc2: 8->5


def _mlp_kernel(x_ref, w1_ref, b1_ref, w2_ref, b2_ref, o_ref):
    # Feature-major: batch on the lane axis -> dense vregs, unmasked vst.
    x = x_ref[...]                                       # (5, TB)
    h = jnp.dot(w1_ref[...], x,
                preferred_element_type=jnp.float32)      # (8, TB)
    h = jnp.maximum(h + b1_ref[...], 0.0)                # bias (8,1) bcast + ReLU
    y = jnp.dot(w2_ref[...], h,
                preferred_element_type=jnp.float32)      # (5, TB)
    o_ref[...] = jnp.maximum(y + b2_ref[...], 0.0).astype(o_ref.dtype)


def _round_up(x, m):
    return (x + m - 1) // m * m


def inner_module_forward_fm(x_fm, w1, b1, w2, b2, *, max_tile=65536):
    """Fused relu(W2 @ relu(W1 @ x + b1) + b2), feature-major activations.

    x_fm: (5, B) f32   (preferred entry point: no transpose/pad plumbing)
    w1:   (8, 5) f32   (PyTorch Linear layout: (out_features, in_features))
    b1:   (8,)   f32
    w2:   (5, 8) f32
    b2:   (5,)   f32
    returns (5, B) f32
    """
    F, B = x_fm.shape
    assert F == IN1

    # Tile size: as large as possible (amortize per-grid-step overhead, stay
    # VMEM-safe on v7x), but at most ~half the batch so v7x megacore can split
    # the grid across both TensorCores when B is large.
    half = -(-max(B, 1) // 2)
    TB = min(_round_up(max_tile, 128), _round_up(half, 128))
    TB = max(TB, 128)

    # Pad batch only to a lane multiple (128), not to a multiple of TB; the
    # partial last grid block is masked on write and columns are independent.
    Bp = _round_up(max(B, 1), 128)
    grid = (pl.cdiv(Bp, TB),)

    x_p = x_fm.astype(jnp.float32)
    if Bp != B:
        x_p = jnp.pad(x_p, ((0, 0), (0, Bp - B)))
    b1_c = b1.reshape(HID, 1).astype(jnp.float32)
    b2_c = b2.reshape(OUT, 1).astype(jnp.float32)

    cost = pl.CostEstimate(
        flops=2 * Bp * (IN1 * HID + HID * OUT),
        transcendentals=0,
        bytes_accessed=4 * (Bp * (IN1 + OUT)
                            + IN1 * HID + HID + HID * OUT + OUT),
    )

    y_fm = pl.pallas_call(
        _mlp_kernel,
        out_shape=jax.ShapeDtypeStruct((OUT, Bp), jnp.float32),
        grid=grid,
        in_specs=[
            pl.BlockSpec((IN1, TB), lambda i: (0, i)),    # x tile (pipelined)
            pl.BlockSpec((HID, IN1), lambda i: (0, 0)),   # w1 (resident)
            pl.BlockSpec((HID, 1), lambda i: (0, 0)),     # b1 (resident)
            pl.BlockSpec((OUT, HID), lambda i: (0, 0)),   # w2 (resident)
            pl.BlockSpec((OUT, 1), lambda i: (0, 0)),     # b2 (resident)
        ],
        out_specs=pl.BlockSpec((OUT, TB), lambda i: (0, i)),
        compiler_params=pltpu.CompilerParams(
            dimension_semantics=("parallel",),
            vmem_limit_bytes=32 * 1024 * 1024,
        ),
        cost_estimate=cost,
    )(x_p, w1.astype(jnp.float32), b1_c, w2.astype(jnp.float32), b2_c)

    return y_fm[:, :B]


def inner_module_forward(x, w1, b1, w2, b2, *, max_tile=65536):
    """PyTorch-convention wrapper: x (B, 5) -> (B, 5).

    Note: keeps the module's (batch, features) API; if the surrounding model
    can stay feature-major, call `inner_module_forward_fm` directly and skip
    the two transpose passes.
    """
    y_fm = inner_module_forward_fm(x.T, w1, b1, w2, b2, max_tile=max_tile)
    return y_fm.T


def init_params(key):
    """Deterministic init mimicking torch.nn.Linear's uniform(+-1/sqrt(fan_in)).

    Weights kept in PyTorch (out_features, in_features) layout.
    """
    k1, k2, k3, k4 = jax.random.split(key, 4)
    bound1 = 1.0 / (IN1 ** 0.5)
    bound2 = 1.0 / (HID ** 0.5)
    w1 = jax.random.uniform(k1, (HID, IN1), jnp.float32, -bound1, bound1)
    b1 = jax.random.uniform(k2, (HID,), jnp.float32, -bound1, bound1)
    w2 = jax.random.uniform(k3, (OUT, HID), jnp.float32, -bound2, bound2)
    b2 = jax.random.uniform(k4, (OUT,), jnp.float32, -bound2, bound2)
    return w1, b1, w2, b2


def _ref(x, w1, b1, w2, b2):
    return jnp.maximum(jnp.maximum(x @ w1.T + b1, 0.0) @ w2.T + b2, 0.0)


if __name__ == "__main__":
    key = jax.random.PRNGKey(0)
    kx, kx2, kp = jax.random.split(key, 3)
    w1, b1, w2, b2 = init_params(kp)

    # Small batch (typical test usage of the module).
    batch = 8
    x = jax.random.normal(kx, (batch, IN1), jnp.float32)
    out = jax.block_until_ready(inner_module_forward(x, w1, b1, w2, b2))
    assert out.shape == (batch, OUT)
    assert jnp.allclose(out, _ref(x, w1, b1, w2, b2), atol=1e-5, rtol=1e-5)

    # Feature-major entry point (no layout plumbing), same small batch.
    out_fm = jax.block_until_ready(inner_module_forward_fm(x.T, w1, b1, w2, b2))
    assert out_fm.shape == (OUT, batch)
    assert jnp.allclose(out_fm.T, _ref(x, w1, b1, w2, b2), atol=1e-5, rtol=1e-5)

    # Larger batch to exercise 128-padding + a multi-step grid (TB = 512 here,
    # 2 grid steps -> both v7x TensorCores active).
    batch2 = 1000
    x2 = jax.random.normal(kx2, (batch2, IN1), jnp.float32)
    out2 = jax.block_until_ready(inner_module_forward(x2, w1, b1, w2, b2))
    assert out2.shape == (batch2, OUT)
    assert jnp.allclose(out2, _ref(x2, w1, b1, w2, b2), atol=1e-5, rtol=1e-5)

    print("KERNEL_OK")
</pallas_src>

<mosaic_0001>
module attributes {stable_mosaic.version = 11 : i64} {
  func.func @_mlp_kernel(%arg0: i32, %arg1: memref<5x128xf32, #tpu.memory_space<vmem>>, %arg2: memref<8x5xf32, #tpu.memory_space<vmem>>, %arg3: memref<8x1xf32, #tpu.memory_space<vmem>>, %arg4: memref<5x8xf32, #tpu.memory_space<vmem>>, %arg5: memref<5x1xf32, #tpu.memory_space<vmem>>, %arg6: memref<5x128xf32, #tpu.memory_space<vmem>>) attributes {dimension_semantics = [#tpu.dimension_semantics<parallel>], iteration_bounds = array<i64: 1>, scalar_prefetch = 0 : i64, scratch_operands = 0 : i64, tpu.core_type = #tpu.core_type<tc>, window_params = [{transform_indices = @transform_0, window_bounds = array<i64: 5, 128>}, {pipeline_mode = #tpu.pipeline_mode<synchronous>, transform_indices = @transform_1, window_bounds = array<i64: 8, 5>}, {pipeline_mode = #tpu.pipeline_mode<synchronous>, transform_indices = @transform_2, window_bounds = array<i64: 8, 1>}, {pipeline_mode = #tpu.pipeline_mode<synchronous>, transform_indices = @transform_3, window_bounds = array<i64: 5, 8>}, {pipeline_mode = #tpu.pipeline_mode<synchronous>, transform_indices = @transform_4, window_bounds = array<i64: 5, 1>}, {transform_indices = @transform_5, window_bounds = array<i64: 5, 128>}]} {
    %c0 = arith.constant 0 : index
    %c0_0 = arith.constant 0 : index
    %0 = vector.load %arg1[%c0, %c0_0] : memref<5x128xf32, #tpu.memory_space<vmem>>, vector<5x128xf32>
    %c0_1 = arith.constant 0 : index
    %c0_2 = arith.constant 0 : index
    %1 = vector.load %arg2[%c0_1, %c0_2] : memref<8x5xf32, #tpu.memory_space<vmem>>, vector<8x5xf32>
    %cst = arith.constant dense<0.000000e+00> : vector<8x128xf32>
    %2 = tpu.matmul %1, %0, %cst {dimension_numbers = #tpu.dot_dimension_numbers<[1], [0], [0], [1], [0, 0, 1, 1], [], []>} : vector<8x5xf32>, vector<5x128xf32>, vector<8x128xf32> -> vector<8x128xf32>
    %c0_3 = arith.constant 0 : index
    %c0_4 = arith.constant 0 : index
    %3 = vector.load %arg3[%c0_3, %c0_4] : memref<8x1xf32, #tpu.memory_space<vmem>>, vector<8x1xf32>
    %4 = vector.broadcast %3 : vector<8x1xf32> to vector<8x128xf32>
    %5 = arith.addf %2, %4 : vector<8x128xf32>
    %cst_5 = arith.constant 0.000000e+00 : f32
    %6 = vector.broadcast %cst_5 : f32 to vector<8x128xf32>
    %7 = arith.maximumf %5, %6 : vector<8x128xf32>
    %c0_6 = arith.constant 0 : index
    %c0_7 = arith.constant 0 : index
    %8 = vector.load %arg4[%c0_6, %c0_7] : memref<5x8xf32, #tpu.memory_space<vmem>>, vector<5x8xf32>
    %cst_8 = arith.constant dense<0.000000e+00> : vector<5x128xf32>
    %9 = tpu.matmul %8, %7, %cst_8 {dimension_numbers = #tpu.dot_dimension_numbers<[1], [0], [0], [1], [0, 0, 1, 1], [], []>} : vector<5x8xf32>, vector<8x128xf32>, vector<5x128xf32> -> vector<5x128xf32>
    %c0_9 = arith.constant 0 : index
    %c0_10 = arith.constant 0 : index
    %10 = vector.load %arg5[%c0_9, %c0_10] : memref<5x1xf32, #tpu.memory_space<vmem>>, vector<5x1xf32>
    %11 = vector.broadcast %10 : vector<5x1xf32> to vector<5x128xf32>
    %12 = arith.addf %9, %11 : vector<5x128xf32>
    %cst_11 = arith.constant 0.000000e+00 : f32
    %13 = vector.broadcast %cst_11 : f32 to vector<5x128xf32>
    %14 = arith.maximumf %12, %13 : vector<5x128xf32>
    %c0_12 = arith.constant 0 : index
    %c0_13 = arith.constant 0 : index
    %15 = vector.load %arg6[%c0_12, %c0_13] : memref<5x128xf32, #tpu.memory_space<vmem>>, vector<5x128xf32>
    tpu.vector_store %arg6[%c0_12, %c0_13], %14 {strides = array<i32>} : memref<5x128xf32, #tpu.memory_space<vmem>>, vector<5x128xf32>,
    return
  }
  func.func @transform_0(%arg0: i32) -> (i32, i32) {
    %c0_i32 = arith.constant 0 : i32
    %c0_i32_0 = arith.constant 0 : i32
    return %c0_i32, %arg0 : i32, i32
  }
  func.func @transform_1(%arg0: i32) -> (i32, i32) {
    %c0_i32 = arith.constant 0 : i32
    %c0_i32_0 = arith.constant 0 : i32
    %c0_i32_1 = arith.constant 0 : i32
    return %c0_i32, %c0_i32_0 : i32, i32
  }
  func.func @transform_2(%arg0: i32) -> (i32, i32) {
    %c0_i32 = arith.constant 0 : i32
    %c0_i32_0 = arith.constant 0 : i32
    %c0_i32_1 = arith.constant 0 : i32
    return %c0_i32, %c0_i32_0 : i32, i32
  }
  func.func @transform_3(%arg0: i32) -> (i32, i32) {
    %c0_i32 = arith.constant 0 : i32
    %c0_i32_0 = arith.constant 0 : i32
    %c0_i32_1 = arith.constant 0 : i32
    return %c0_i32, %c0_i32_0 : i32, i32
  }
  func.func @transform_4(%arg0: i32) -> (i32, i32) {
    %c0_i32 = arith.constant 0 : i32
    %c0_i32_0 = arith.constant 0 : i32
    %c0_i32_1 = arith.constant 0 : i32
    return %c0_i32, %c0_i32_0 : i32, i32
  }
  func.func @transform_5(%arg0: i32) -> (i32, i32) {
    %c0_i32 = arith.constant 0 : i32
    %c0_i32_0 = arith.constant 0 : i32
    return %c0_i32, %arg0 : i32, i32
  }
}

</mosaic_0001>

<llo_original>
// kernel: tpu_custom_call.1
$region0: #{tpu_custom_call.1}
  #allocation0 [shape = 'u32[]', space=smem, size = 0x4, offset = 0x4, fixed_abs, tag = 'smem constant byte address 0x4 - core index']
  #allocation1 [shape = 'u32[144,128]{1,0:T(1,128)}', space=vmem, size = 0x12000, scoped, tag = 'internal scratch']
  %s0 = inlined_call_operand.vmem [shape: f32[5,128], index: 0, kind: input, shape index: {}]
  %s1 = inlined_call_operand.vmem [shape: f32[8,5], index: 1, kind: input, shape index: {}]
  %s2 = inlined_call_operand.vmem [shape: f32[8,1], index: 2, kind: input, shape index: {}]
  %s3 = inlined_call_operand.hbm [shape: f32[5,8], index: 3, kind: input, shape index: {}]
  %s4 = inlined_call_operand.vmem [shape: f32[5,1], index: 4, kind: input, shape index: {}]
  %s5 = inlined_call_operand.hbm [shape: f32[5,128], index: 5, kind: output, shape index: {}]
  %s6 = sld [smem:[#allocation0]]
  $region34: #{tpu_custom_call.1} parent=0
    _
  %s8 = ssub.s32 1, %s6
  %s9 = scalar_select 0, %s8, %s6
  $region1: #{tpu_custom_call.1} parent=0
    #allocation2 [shape = 'u8[4096]{0}', space=vmem, size = 0x1000, scoped, tag = 'input window, operand 3, single buffered']
    #allocation3 [shape = 's32[1]{0}', space=sflag, size = 0x4, scoped, tag = 'scoped memory for tpu_custom_call.1']
    #allocation4 [shape = 's32[1]{0}', space=sflag, size = 0x4, scoped, tag = 'scoped memory for tpu_custom_call.1']
    #allocation5 [shape = 'u8[4096]{0}', space=vmem, size = 0x1000, scoped, tag = 'output window, operand 0, single buffered']
    %10 = vsyncpa [#allocation3], 0
    %11 = vsyncpa [#allocation4], 0
    // Predicated region
    $region2: #{tpu_custom_call.1} parent=1 // pred_check
      _
    $region3: #{tpu_custom_call.1} parent=1 // pred_check_branch
      %13 = sbr.rel (0) target = $region5
    $region4: #{tpu_custom_call.1} parent=1 // pred_region
      _
    $region5: #{tpu_custom_call.1} parent=1 // pred_fallthru
      _
    // Predicated region
    $region6: #{tpu_custom_call.1} parent=1 // pred_check
      _
    $region7: #{tpu_custom_call.1} parent=1 // pred_check_branch
      %15 = sbr.rel (0) target = $region9
    $region8: #{tpu_custom_call.1} parent=1 // pred_region
      _
    $region9: #{tpu_custom_call.1} parent=1 // pred_fallthru
      _
    // Predicated region
    $region10: #{tpu_custom_call.1} parent=1 // pred_check
      _
    $region11: #{tpu_custom_call.1} parent=1 // pred_check_branch
      %17 = sbr.rel (0) target = $region13
    $region12: #{tpu_custom_call.1} parent=1 // pred_region
      _
    $region13: #{tpu_custom_call.1} parent=1 // pred_fallthru
      _
    // Predicated region
    $region14: #{tpu_custom_call.1} parent=1 // pred_check
      _
    $region15: #{tpu_custom_call.1} parent=1 // pred_check_branch
      %19 = sbr.rel (0) target = $region17
    $region16: #{tpu_custom_call.1} parent=1 // pred_region
      %s21 = ssub.s32 128, 128
      %22 = vsyncadd [#allocation3], %s21
      %s24 = sshll.u32 [#allocation2], 4
      %s25 = int_to_ptr.vmem [resolvable:$true] %s24
      %27 = dma.hbm_to_vmem [thread:$0]  %s3, 128, %s25, [#allocation3]
    $region17: #{tpu_custom_call.1} parent=1 // pred_fallthru
      _
    // Predicated region
    $region18: #{tpu_custom_call.1} parent=1 // pred_check
      _
    $region19: #{tpu_custom_call.1} parent=1 // pred_check_branch
      %29 = sbr.rel (0) target = $region21
    $region20: #{tpu_custom_call.1} parent=1 // pred_region
      _
    $region21: #{tpu_custom_call.1} parent=1 // pred_fallthru
      _
    // Predicated region
    $region22: #{tpu_custom_call.1} parent=1 // pred_check
      _
    $region23: #{tpu_custom_call.1} parent=1 // pred_check_branch
      %31 = sbr.rel (0) target = $region25
    $region24: #{tpu_custom_call.1} parent=1 // pred_region
      %32 = dma.done [#allocation3], 128
    $region25: #{tpu_custom_call.1} parent=1 // pred_fallthru
      _
    %v33 = vld [vmem:[%s0] sm:$0x1f]
    %v34 = vld [vmem:[%s1] sm:$0xff]
    %v35 = vld [vmem:[%s2] sm:$0xff]
    %37 = vset.pattern.permute.xlu0 0
    %38 = vperm.xlu0 %37, %v35
    %v39 = vpop.permute.xlu0 %38
    %vm41 = vcmask 39936
    %v43 = vsel %vm41, %v34, 0
    %vm45 = vcmask 1044480
    %v47 = vsel %vm45, %v33, 0
    %49 = vmatprep.subr.mxu0 0.0
    %50 = vmatpush1.msra.mxu0 0.0
    %51 = vmatprep.subr.mxu0 0.0
    %52 = vmatpush1.msra.mxu0 0.0
    %53 = vmatprep.subr.mxu0 0.0
    %54 = vmatpush1.msra.mxu0 0.0
    %55 = vmatprep.subr.mxu0 0.0
    %56 = vmatpush1.msra.mxu0 0.0
    %57 = vmatprep.subr.mxu0 0.0
    %58 = vmatpush1.msra.mxu0 0.0
    %59 = vmatprep.subr.mxu0 0.0
    %60 = vmatpush1.msra.mxu0 0.0
    %61 = vmatprep.subr.mxu0 0.0
    %62 = vmatpush1.msra.mxu0 0.0
    %63 = vmatprep.subr.mxu0 0.0
    %64 = vmatpush1.msra.mxu0 0.0
    %65 = vmatprep.subr.mxu0 0.0
    %66 = vmatpush1.msra.mxu0 0.0
    %67 = vmatprep.subr.mxu0 0.0
    %68 = vmatpush1.msra.mxu0 0.0
    %69 = vmatprep.subr.mxu0 0.0
    %70 = vmatpush1.msra.mxu0 0.0
    %71 = vmatprep.subr.mxu0 0.0
    %72 = vmatpush1.msra.mxu0 0.0
    %73 = vmatprep.subr.mxu0 0.0
    %74 = vmatpush1.msra.mxu0 0.0
    %75 = vmatprep.subr.mxu0 0.0
    %76 = vmatpush1.msra.mxu0 0.0
    %77 = vmatprep.subr.mxu0 0.0
    %78 = vmatpush1.msra.mxu0 0.0
    %79 = vmatprep.subr.mxu0 0.0
    %80 = vmatpush1.msra.mxu0 %v47
    %81 = vmatprep.subr.mxu0 0.0
    %82 = vmatpush2.msra.mxu0 0.0
    %83 = vmatprep.subr.mxu0 0.0
    %84 = vmatpush2.msra.mxu0 0.0
    %85 = vmatprep.subr.mxu0 0.0
    %86 = vmatpush2.msra.mxu0 0.0
    %87 = vmatprep.subr.mxu0 0.0
    %88 = vmatpush2.msra.mxu0 0.0
    %89 = vmatprep.subr.mxu0 0.0
    %90 = vmatpush2.msra.mxu0 0.0
    %91 = vmatprep.subr.mxu0 0.0
    %92 = vmatpush2.msra.mxu0 0.0
    %93 = vmatprep.subr.mxu0 0.0
    %94 = vmatpush2.msra.mxu0 0.0
    %95 = vmatprep.subr.mxu0 0.0
    %96 = vmatpush2.msra.mxu0 0.0
    %97 = vmatprep.subr.mxu0 0.0
    %98 = vmatpush2.msra.mxu0 0.0
    %99 = vmatprep.subr.mxu0 0.0
    %100 = vmatpush2.msra.mxu0 0.0
    %101 = vmatprep.subr.mxu0 0.0
    %102 = vmatpush2.msra.mxu0 0.0
    %103 = vmatprep.subr.mxu0 0.0
    %104 = vmatpush2.msra.mxu0 0.0
    %105 = vmatprep.subr.mxu0 0.0
    %106 = vmatpush2.msra.mxu0 0.0
    %107 = vmatprep.subr.mxu0 0.0
    %108 = vmatpush2.msra.mxu0 0.0
    %109 = vmatprep.subr.mxu0 0.0
    %110 = vmatpush2.msra.mxu0 0.0
    %111 = vmatprep.subr.mxu0 0.0
    %112 = vmatpush2.msra.mxu0 0.0
    %113 = vmatprep.mubr.f32.mxu0 0.0
    %114 = vmatmul.mubr.f32.gmra.mxu0 %v43
    %v115 = vpop.f32.mrf.mxu0
    %v116 = vadd.f32 %v39, %v115
    %v117 = vpop.f32.mrf.mxu0
    %118 = vdwg.mxu0
    %v119 = vmax.f32 %v116, 0.0
    %v120 = vld [vmem:[#allocation2] sm:$0x1f]
    %v121 = vld [vmem:[%s4] sm:$0x1f]
    %123 = vset.pattern.permute.xlu0 0
    %124 = vperm.xlu0 %123, %v121
    %v125 = vpop.permute.xlu0 %124
    %vm127 = vcmask 64512
    %v129 = vsel %vm127, %v120, 0
    %131 = vmatprep.subr.mxu0 0.0
    %132 = vmatpush1.msra.mxu0 0.0
    %133 = vmatprep.subr.mxu0 0.0
    %134 = vmatpush1.msra.mxu0 0.0
    %135 = vmatprep.subr.mxu0 0.0
    %136 = vmatpush1.msra.mxu0 0.0
    %137 = vmatprep.subr.mxu0 0.0
    %138 = vmatpush1.msra.mxu0 0.0
    %139 = vmatprep.subr.mxu0 0.0
    %140 = vmatpush1.msra.mxu0 0.0
    %141 = vmatprep.subr.mxu0 0.0
    %142 = vmatpush1.msra.mxu0 0.0
    %143 = vmatprep.subr.mxu0 0.0
    %144 = vmatpush1.msra.mxu0 0.0
    %145 = vmatprep.subr.mxu0 0.0
    %146 = vmatpush1.msra.mxu0 0.0
    %147 = vmatprep.subr.mxu0 0.0
    %148 = vmatpush1.msra.mxu0 0.0
    %149 = vmatprep.subr.mxu0 0.0
    %150 = vmatpush1.msra.mxu0 0.0
    %151 = vmatprep.subr.mxu0 0.0
    %152 = vmatpush1.msra.mxu0 0.0
    %153 = vmatprep.subr.mxu0 0.0
    %154 = vmatpush1.msra.mxu0 0.0
    %155 = vmatprep.subr.mxu0 0.0
    %156 = vmatpush1.msra.mxu0 0.0
    %157 = vmatprep.subr.mxu0 0.0
    %158 = vmatpush1.msra.mxu0 0.0
    %159 = vmatprep.subr.mxu0 0.0
    %160 = vmatpush1.msra.mxu0 0.0
    %161 = vmatprep.subr.mxu0 0.0
    %162 = vmatpush1.msra.mxu0 %v119
    %163 = vmatprep.subr.mxu0 0.0
    %164 = vmatpush2.msra.mxu0 0.0
    %165 = vmatprep.subr.mxu0 0.0
    %166 = vmatpush2.msra.mxu0 0.0
    %167 = vmatprep.subr.mxu0 0.0
    %168 = vmatpush2.msra.mxu0 0.0
    %169 = vmatprep.subr.mxu0 0.0
    %170 = vmatpush2.msra.mxu0 0.0
    %171 = vmatprep.subr.mxu0 0.0
    %172 = vmatpush2.msra.mxu0 0.0
    %173 = vmatprep.subr.mxu0 0.0
    %174 = vmatpush2.msra.mxu0 0.0
    %175 = vmatprep.subr.mxu0 0.0
    %176 = vmatpush2.msra.mxu0 0.0
    %177 = vmatprep.subr.mxu0 0.0
    %178 = vmatpush2.msra.mxu0 0.0
    %179 = vmatprep.subr.mxu0 0.0
    %180 = vmatpush2.msra.mxu0 0.0
    %181 = vmatprep.subr.mxu0 0.0
    %182 = vmatpush2.msra.mxu0 0.0
    %183 = vmatprep.subr.mxu0 0.0
    %184 = vmatpush2.msra.mxu0 0.0
    %185 = vmatprep.subr.mxu0 0.0
    %186 = vmatpush2.msra.mxu0 0.0
    %187 = vmatprep.subr.mxu0 0.0
    %188 = vmatpush2.msra.mxu0 0.0
    %189 = vmatprep.subr.mxu0 0.0
    %190 = vmatpush2.msra.mxu0 0.0
    %191 = vmatprep.subr.mxu0 0.0
    %192 = vmatpush2.msra.mxu0 0.0
    %193 = vmatprep.subr.mxu0 0.0
    %194 = vmatpush2.msra.mxu0 0.0
    %195 = vmatprep.mubr.f32.mxu0 0.0
    %196 = vmatmul.mubr.f32.gmra.mxu0 %v129
    %v197 = vpop.f32.mrf.mxu0
    %v198 = vadd.f32 %v125, %v197
    %v199 = vpop.f32.mrf.mxu0
    %200 = vdwg.mxu0
    %v201 = vmax.f32 %v198, 0.0
    %202 = vst [vmem:[#allocation5] sm:$0x1f] %v201
    // Predicated region
    $region26: #{tpu_custom_call.1} parent=1 // pred_check
      _
    $region27: #{tpu_custom_call.1} parent=1 // pred_check_branch
      %204 = sbr.rel (0) target = $region29
    $region28: #{tpu_custom_call.1} parent=1 // pred_region
      %s206 = ssub.s32 128, 128
      %207 = vsyncadd [#allocation4], %s206
      %s209 = sshll.u32 [#allocation5], 4
      %s210 = int_to_ptr.vmem [resolvable:$true] %s209
      %212 = dma.vmem_to_hbm [thread:$0]  %s210, 128, %s5, [#allocation4]
    $region29: #{tpu_custom_call.1} parent=1 // pred_fallthru
      _
    // Predicated region
    $region30: #{tpu_custom_call.1} parent=1 // pred_check
      _
    $region31: #{tpu_custom_call.1} parent=1 // pred_check_branch
      %214 = sbr.rel (0) target = $region33
    $region32: #{tpu_custom_call.1} parent=1 // pred_region
      %215 = dma.done [#allocation4], 128
    $region33: #{tpu_custom_call.1} parent=1 // pred_fallthru
      _
    %216 = vsyncpa [#allocation3], 1
    %217 = vsyncpa [#allocation4], 1

</llo_original>
